<compile_context>
chip_gen: v7x
topology: tpu7x:2x2x1
jax: 0.10.0
libtpu: 0.0.40
codegen_flags: <defaults>
</compile_context>

<pallas_src>
import functools

import jax
import jax.numpy as jnp
from jax import lax
from jax.experimental import pallas as pl
from jax.experimental.pallas import tpu as pltpu

_DEFAULT_EPSILON = 0.1
_INV_SQRT2 = 0.7071067811865476   # 1/sqrt(2)
_SQRT_2_OVER_PI = 0.7978845608028654


def _sqgelu_math_f32(xf, epsilon, use_tanh_approx=False):
    """f32 SQGELU math, shared by the kernel body, the ragged tail, and the ref."""
    u = xf + epsilon * (xf * xf)
    if use_tanh_approx:
        # tanh-based normal-CDF approximation -> transcendental lands on the EUP
        # slot (separate bundle slot), freeing VALU on v6e/v7x. ~1e-3 deviation.
        phi = 0.5 * (1.0 + jnp.tanh(_SQRT_2_OVER_PI * (u + 0.044715 * (u * u * u))))
    else:
        phi = 0.5 * (1.0 + lax.erf(u * _INV_SQRT2))
    return xf * phi


def _sqgelu_kernel(x_ref, o_ref, *, epsilon: float, use_tanh_approx: bool):
    x = x_ref[...].astype(jnp.float32)
    y = _sqgelu_math_f32(x, epsilon, use_tanh_approx)
    o_ref[...] = y.astype(o_ref.dtype)


def _vmem_capacity_bytes() -> int:
    try:
        return int(pltpu.get_tpu_info().vmem_capacity_bytes)
    except Exception:
        return 128 * 1024 * 1024   # conservative v5e/v6e default


def sqgelu(x: jax.Array, epsilon: float = _DEFAULT_EPSILON,
           *, use_tanh_approx: bool = False) -> jax.Array:
    """Apply SQGELU elementwise. Any shape; streamed through a lane-dense 2D view."""
    orig_shape = x.shape
    dtype = x.dtype
    n = x.size
    if n == 0:
        return x

    itemsize = jnp.dtype(dtype).itemsize
    vmem_cap = _vmem_capacity_bytes()
    # 8 MiB tiles on 128-MiB-VMEM chips (v5e/v6e), 4 MiB on v7x (64 MiB/TC).
    target_tile_bytes = (8 * 1024 * 1024 if vmem_cap >= 96 * 1024 * 1024
                         else 4 * 1024 * 1024)

    # --- lane-dense 2D view, no full-array pad/slice round trip -------------
    lanes = None
    for cand in (1024, 512, 256, 128):
        if n % cand == 0:
            lanes = cand
            break
    x_flat = x.reshape(-1)
    if lanes is None:
        lanes = 128
        n_main = (n // lanes) * lanes        # 128-aligned prefix through the kernel
    else:
        n_main = n

    if n_main == 0:
        # Tiny ragged tensor (<128 elems): plain jnp is cheaper than any kernel.
        y = _sqgelu_math_f32(x_flat.astype(jnp.float32), float(epsilon),
                             use_tanh_approx).astype(dtype)
        return y.reshape(orig_shape)

    rows = n_main // lanes
    x2d = x_flat[:n_main].reshape(rows, lanes)

    # --- tile sizing: ~target_tile_bytes per block, block_rows % 8 == 0 -----
    block_rows = max(8, target_tile_bytes // (lanes * itemsize))
    if block_rows >= rows:
        block_rows = rows                     # single block == full array dim (OK)
    else:
        block_rows = max(8, (block_rows // 8) * 8)

    # Guarantee >=2 grid steps when possible so both v7x TensorCores get work.
    if pl.cdiv(rows, block_rows) == 1 and rows >= 16:
        block_rows = max(8, ((rows // 2) // 8) * 8)

    grid = (pl.cdiv(rows, block_rows),)       # ragged last block masked by Pallas

    tile_bytes = block_rows * lanes * itemsize
    # 2 in + 2 out double buffers + headroom, capped well under physical VMEM.
    vmem_limit = max(32 * 1024 * 1024, 6 * tile_bytes)
    vmem_limit = min(vmem_limit, int(0.65 * vmem_cap))
    vmem_limit = max(vmem_limit, 5 * tile_bytes)

    # erf polynomial is ~25 flops/elem on top of the ~7 elementwise ops.
    flops_per_elem = 32

    out2d = pl.pallas_call(
        functools.partial(_sqgelu_kernel, epsilon=float(epsilon),
                          use_tanh_approx=bool(use_tanh_approx)),
        out_shape=jax.ShapeDtypeStruct((rows, lanes), dtype),
        grid=grid,
        in_specs=[pl.BlockSpec((block_rows, lanes), lambda i: (i, 0))],
        out_specs=pl.BlockSpec((block_rows, lanes), lambda i: (i, 0)),
        compiler_params=pltpu.CompilerParams(
            dimension_semantics=("parallel",),
            vmem_limit_bytes=vmem_limit,
        ),
        cost_estimate=pl.CostEstimate(
            flops=flops_per_elem * n_main,
            transcendentals=n_main,
            bytes_accessed=2 * n_main * itemsize,
        ),
    )(x2d)

    out_main = out2d.reshape(-1)
    if n_main != n:
        # <=127-element tail: plain jnp, no padded copies of the whole tensor.
        tail = _sqgelu_math_f32(x_flat[n_main:].astype(jnp.float32),
                                float(epsilon), use_tanh_approx).astype(dtype)
        out_flat = jnp.concatenate([out_main, tail])
    else:
        out_flat = out_main
    return out_flat.reshape(orig_shape)


def sqgelu_ref(x, epsilon: float = _DEFAULT_EPSILON):
    # pure-JAX reference matching the PyTorch forward, computed in f32
    xf = x.astype(jnp.float32)
    y = xf * 0.5 * (1.0 + lax.erf((xf + epsilon * xf * xf) / jnp.sqrt(2.0)))
    return y.astype(x.dtype)


if __name__ == "__main__":
    key = jax.random.PRNGKey(0)

    # f32, NCHW-like shape (batch=2, channels=4, spatial=16x16)
    x = jax.random.normal(key, (2, 4, 16, 16), dtype=jnp.float32)
    out = sqgelu(x)
    jax.block_until_ready(out)
    ref = sqgelu_ref(x)
    assert out.shape == x.shape and out.dtype == x.dtype
    assert jnp.max(jnp.abs(out - ref)) < 1e-5

    # bf16 smoke test (f32 internal math, cast on store)
    xb = x.astype(jnp.bfloat16)
    outb = sqgelu(xb)
    jax.block_until_ready(outb)
    refb = sqgelu_ref(xb)
    assert outb.shape == xb.shape and outb.dtype == xb.dtype
    assert jnp.max(jnp.abs(outb.astype(jnp.float32) - refb.astype(jnp.float32))) < 2e-2

    # ragged-size path (prefix kernel + jnp tail, no pad/slice round trip)
    xr = jax.random.normal(jax.random.PRNGKey(1), (7, 131), dtype=jnp.float32)
    outr = sqgelu(xr)
    jax.block_until_ready(outr)
    assert outr.shape == xr.shape
    assert jnp.max(jnp.abs(outr - sqgelu_ref(xr))) < 1e-5

    # opt-in EUP (tanh) fast path: ~1e-3 deviation from exact erf is expected
    outf = sqgelu(x, use_tanh_approx=True)
    jax.block_until_ready(outf)
    assert jnp.max(jnp.abs(outf - ref)) < 5e-2

    print("KERNEL_OK")
</pallas_src>

<mosaic_0001>
module attributes {stable_mosaic.version = 11 : i64} {
  func.func @_sqgelu_kernel(%arg0: i32, %arg1: memref<2x1024xf32, #tpu.memory_space<vmem>>, %arg2: memref<2x1024xf32, #tpu.memory_space<vmem>>) attributes {dimension_semantics = [#tpu.dimension_semantics<parallel>], iteration_bounds = array<i64: 1>, scalar_prefetch = 0 : i64, scratch_operands = 0 : i64, tpu.core_type = #tpu.core_type<tc>, window_params = [{transform_indices = @transform_0, window_bounds = array<i64: 2, 1024>}, {transform_indices = @transform_1, window_bounds = array<i64: 2, 1024>}]} {
    %c0 = arith.constant 0 : index
    %c0_0 = arith.constant 0 : index
    %0 = vector.load %arg1[%c0, %c0_0] : memref<2x1024xf32, #tpu.memory_space<vmem>>, vector<2x1024xf32>
    %1 = arith.mulf %0, %0 : vector<2x1024xf32>
    %cst = arith.constant 1.000000e-01 : f32
    %2 = vector.broadcast %cst : f32 to vector<2x1024xf32>
    %3 = arith.mulf %2, %1 : vector<2x1024xf32>
    %4 = arith.addf %0, %3 : vector<2x1024xf32>
    %cst_1 = arith.constant 0.707106769 : f32
    %5 = vector.broadcast %cst_1 : f32 to vector<2x1024xf32>
    %6 = arith.mulf %4, %5 : vector<2x1024xf32>
    %7 = math.erf %6 : vector<2x1024xf32>
    %cst_2 = arith.constant 1.000000e+00 : f32
    %8 = vector.broadcast %cst_2 : f32 to vector<2x1024xf32>
    %9 = arith.addf %8, %7 : vector<2x1024xf32>
    %cst_3 = arith.constant 5.000000e-01 : f32
    %10 = vector.broadcast %cst_3 : f32 to vector<2x1024xf32>
    %11 = arith.mulf %10, %9 : vector<2x1024xf32>
    %12 = arith.mulf %0, %11 : vector<2x1024xf32>
    %c0_4 = arith.constant 0 : index
    %c0_5 = arith.constant 0 : index
    %13 = vector.load %arg2[%c0_4, %c0_5] : memref<2x1024xf32, #tpu.memory_space<vmem>>, vector<2x1024xf32>
    tpu.vector_store %arg2[%c0_4, %c0_5], %12 {strides = array<i32>} : memref<2x1024xf32, #tpu.memory_space<vmem>>, vector<2x1024xf32>,
    return
  }
  func.func @transform_0(%arg0: i32) -> (i32, i32) {
    %c0_i32 = arith.constant 0 : i32
    %c0_i32_0 = arith.constant 0 : i32
    return %arg0, %c0_i32 : i32, i32
  }
  func.func @transform_1(%arg0: i32) -> (i32, i32) {
    %c0_i32 = arith.constant 0 : i32
    %c0_i32_0 = arith.constant 0 : i32
    return %arg0, %c0_i32 : i32, i32
  }
}

</mosaic_0001>

<llo_original>
// kernel: tpu_custom_call.1
$region0: #{tpu_custom_call.1}
  #allocation0 [shape = 'u32[]', space=smem, size = 0x4, offset = 0x4, fixed_abs, tag = 'smem constant byte address 0x4 - core index']
  #allocation1 [shape = 'u32[144,128]{1,0:T(1,128)}', space=vmem, size = 0x12000, scoped, tag = 'internal scratch']
  %s0 = inlined_call_operand.hbm [shape: f32[2,1024], index: 0, kind: input, shape index: {}]
  %s1 = inlined_call_operand.hbm [shape: f32[2,1024], index: 1, kind: output, shape index: {}]
  %s2 = sld [smem:[#allocation0]]
  $region18: #{tpu_custom_call.1} parent=0
    _
  %s4 = ssub.s32 1, %s2
  %s5 = scalar_select 0, %s4, %s2
  $region1: #{tpu_custom_call.1} parent=0
    #allocation2 [shape = 'u8[8192]{0}', space=vmem, size = 0x2000, scoped, tag = 'input window, operand 0, single buffered']
    #allocation3 [shape = 's32[1]{0}', space=sflag, size = 0x4, scoped, tag = 'scoped memory for tpu_custom_call.1']
    #allocation4 [shape = 's32[1]{0}', space=sflag, size = 0x4, scoped, tag = 'scoped memory for tpu_custom_call.1']
    #allocation5 [shape = 'u8[8192]{0}', space=vmem, size = 0x2000, scoped, tag = 'output window, operand 0, single buffered']
    %6 = vsyncpa [#allocation3], 0
    %7 = vsyncpa [#allocation4], 0
    // Predicated region
    $region2: #{tpu_custom_call.1} parent=1 // pred_check
      _
    $region3: #{tpu_custom_call.1} parent=1 // pred_check_branch
      %9 = sbr.rel (0) target = $region5
    $region4: #{tpu_custom_call.1} parent=1 // pred_region
      %s11 = ssub.s32 256, 256
      %12 = vsyncadd [#allocation3], %s11
      %s14 = sshll.u32 [#allocation2], 4
      %s15 = int_to_ptr.vmem [resolvable:$true] %s14
      %17 = dma.hbm_to_vmem [thread:$0]  %s0, 256, %s15, [#allocation3]
    $region5: #{tpu_custom_call.1} parent=1 // pred_fallthru
      _
    // Predicated region
    $region6: #{tpu_custom_call.1} parent=1 // pred_check
      _
    $region7: #{tpu_custom_call.1} parent=1 // pred_check_branch
      %19 = sbr.rel (0) target = $region9
    $region8: #{tpu_custom_call.1} parent=1 // pred_region
      %20 = dma.done [#allocation3], 256
    $region9: #{tpu_custom_call.1} parent=1 // pred_fallthru
      _
    %v21 = vld [vmem:[#allocation2] sm:$0xff]
    %v22 = vld [vmem:[#allocation2 + $0x8] sm:$0xff]
    %v23 = vmul.f32 %v21, %v21
    %v24 = vmul.f32 %v22, %v22
    %v25 = vmul.f32 %v23, 0.1
    %v26 = vmul.f32 %v24, 0.1
    %v27 = vadd.f32 %v21, %v25
    %v28 = vadd.f32 %v22, %v26
    %v29 = vmul.f32 %v27, 0.70710677
    %v30 = vmul.f32 %v28, 0.70710677
    %v31 = verf.f32.pop %v29
    %v32 = verf.f32.pop %v30
    %v33 = vadd.f32 %v31, 1.0
    %v34 = vadd.f32 %v32, 1.0
    %v35 = vmul.f32 %v33, 0.5
    %v36 = vmul.f32 %v34, 0.5
    %v37 = vmul.f32 %v21, %v35
    %v38 = vmul.f32 %v22, %v36
    %39 = vst [vmem:[#allocation5] sm:$0xff] %v37
    %40 = vst [vmem:[#allocation5 + $0x8] sm:$0xff] %v38
    // Predicated region
    $region10: #{tpu_custom_call.1} parent=1 // pred_check
      _
    $region11: #{tpu_custom_call.1} parent=1 // pred_check_branch
      %42 = sbr.rel (0) target = $region13
    $region12: #{tpu_custom_call.1} parent=1 // pred_region
      %s44 = ssub.s32 256, 256
      %45 = vsyncadd [#allocation4], %s44
      %s47 = sshll.u32 [#allocation5], 4
      %s48 = int_to_ptr.vmem [resolvable:$true] %s47
      %50 = dma.vmem_to_hbm [thread:$0]  %s48, 256, %s1, [#allocation4]
    $region13: #{tpu_custom_call.1} parent=1 // pred_fallthru
      _
    // Predicated region
    $region14: #{tpu_custom_call.1} parent=1 // pred_check
      _
    $region15: #{tpu_custom_call.1} parent=1 // pred_check_branch
      %52 = sbr.rel (0) target = $region17
    $region16: #{tpu_custom_call.1} parent=1 // pred_region
      %53 = dma.done [#allocation4], 256
    $region17: #{tpu_custom_call.1} parent=1 // pred_fallthru
      _
    %54 = vsyncpa [#allocation3], 1
    %55 = vsyncpa [#allocation4], 1

</llo_original>
